<compile_context>
chip_gen: v5e
topology: v5e:2x2
jax: 0.10.0
libtpu: 0.0.40
codegen_flags: <defaults>
</compile_context>

<pallas_src>
import functools

import jax
import jax.numpy as jnp
from jax.experimental import pallas as pl
from jax.experimental.pallas import tpu as pltpu

DIM = 2
HDIM = 32
N_HIDDEN = 4                      # (Linear(hdim,hdim) + Tanh) blocks after the first layer
N_LAYERS = N_HIDDEN + 2           # 6 Linear layers total
DEFAULT_BLOCK_B = 4096            # batch rows (lanes) per grid step (multiple of 128)


def _round_up(x, m):
    return ((x + m - 1) // m) * m


def _mlp_kernel(x_ref, w0_ref, b0_ref, wmid_ref, bmid_ref, wlast_ref, blast_ref,
                out_ref):
    """One batch tile (on the lane axis) through the whole 6-layer MLP.

    x_ref     : (DIM, bb)              batch-in-lanes input tile
    w0_ref    : (HDIM, DIM)            first-layer weight (out, in)
    b0_ref    : (HDIM, 1)              first-layer bias (broadcast over lanes)
    wmid_ref  : (N_HIDDEN, HDIM, HDIM) stacked hidden weights (out, in)
    bmid_ref  : (N_HIDDEN, HDIM, 1)    stacked hidden biases
    wlast_ref : (DIM, HDIM)            last-layer weight (out, in)
    blast_ref : (DIM, 1)               last-layer bias
    out_ref   : (DIM, bb)              batch-in-lanes output tile
    """
    x = x_ref[...]                                                   # (DIM, bb)
    h = jnp.tanh(
        jnp.dot(w0_ref[...], x, preferred_element_type=jnp.float32)
        + b0_ref[...])                                               # (HDIM, bb)
    for li in range(N_HIDDEN):                                       # static unroll
        h = jnp.tanh(
            jnp.dot(wmid_ref[li], h, preferred_element_type=jnp.float32)
            + bmid_ref[li])
    out_ref[...] = (
        jnp.dot(wlast_ref[...], h, preferred_element_type=jnp.float32)
        + blast_ref[...]).astype(out_ref.dtype)                      # (DIM, bb)


def _choose_bb(B, block_b):
    """Pick the batch-tile width (lanes): big, 128-aligned, and >=2 tiles
    when there is enough work so both TCs are used on v7x."""
    B128 = _round_up(B, 128)
    bb = min(block_b, B128)
    bb = _round_up(bb, 128)
    if B128 // bb < 2 and B128 >= 256:
        bb = _round_up(B128 // 2, 128)
    return bb


@functools.partial(jax.jit, static_argnames=("block_b",))
def matmul_system_forward(s, x, w0, b0, w_mid, b_mid, w_last, b_last,
                          *, block_b=DEFAULT_BLOCK_B):
    """Forward pass: returns net(x), ignoring the time argument s.

    x      : (B, DIM)
    w0     : (HDIM, DIM),  b0     : (HDIM, 1)
    w_mid  : (N_HIDDEN, HDIM, HDIM), b_mid : (N_HIDDEN, HDIM, 1)
    w_last : (DIM, HDIM),  b_last : (DIM, 1)
    All weights are PyTorch-native (out, in); the kernel computes h = W @ h + b.
    """
    del s  # matches nn.Module.forward(s, x) -> net(x)
    B, dim = x.shape
    assert dim == DIM

    bb = _choose_bb(B, block_b)
    B_pad = _round_up(B, bb)
    n_tiles = B_pad // bb

    # Batch-in-lanes layout; only batch padding (8 B/row), no feature padding.
    x_t = jnp.pad(x, ((0, B_pad - B), (0, 0))).T                     # (DIM, B_pad)

    out_t = pl.pallas_call(
        _mlp_kernel,
        out_shape=jax.ShapeDtypeStruct((DIM, B_pad), x.dtype),
        grid=(n_tiles,),
        in_specs=[
            # x: tiled along the batch (lane) axis
            pl.BlockSpec((DIM, bb), lambda i: (0, i)),
            # params: constant block index -> DMA'd once, resident in VMEM
            pl.BlockSpec((HDIM, DIM), lambda i: (0, 0)),
            pl.BlockSpec((HDIM, 1), lambda i: (0, 0)),
            pl.BlockSpec((N_HIDDEN, HDIM, HDIM), lambda i: (0, 0, 0)),
            pl.BlockSpec((N_HIDDEN, HDIM, 1), lambda i: (0, 0, 0)),
            pl.BlockSpec((DIM, HDIM), lambda i: (0, 0)),
            pl.BlockSpec((DIM, 1), lambda i: (0, 0)),
        ],
        out_specs=pl.BlockSpec((DIM, bb), lambda i: (0, i)),
        compiler_params=pltpu.CompilerParams(
            dimension_semantics=("parallel",)),  # shards batch tiles across TCs on v7x
    )(x_t, w0, b0, w_mid, b_mid, w_last, b_last)

    return out_t[:, :B].T


def init_params(key, dim=DIM, hdim=HDIM, n_hidden=N_HIDDEN, dtype=jnp.float32):
    """Deterministic synthetic init, PyTorch-native (out, in) weight layout."""
    sizes = [(hdim, dim)] + [(hdim, hdim)] * n_hidden + [(dim, hdim)]
    params = []
    for fan_out, fan_in in sizes:
        key, kw, kb = jax.random.split(key, 3)
        scale = 1.0 / jnp.sqrt(jnp.asarray(fan_in, dtype))
        w = jax.random.normal(kw, (fan_out, fan_in), dtype) * scale
        b = jax.random.normal(kb, (fan_out,), dtype) * scale
        params.append((w, b))
    return params


def pack_params(params):
    """Split the 6 (W, b) pairs into kernel inputs (no zero padding needed)."""
    w0, b0 = params[0]
    w_last, b_last = params[-1]
    w_mid = jnp.stack([params[i][0] for i in range(1, 1 + N_HIDDEN)])       # (4, 32, 32)
    b_mid = jnp.stack([params[i][1][:, None] for i in range(1, 1 + N_HIDDEN)])  # (4, 32, 1)
    return (w0, b0[:, None], w_mid, b_mid, w_last, b_last[:, None])


def _reference_forward(x, params):
    h = x
    for i, (w, b) in enumerate(params):
        h = h @ w.T + b
        if i < len(params) - 1:
            h = jnp.tanh(h)
    return h


if __name__ == "__main__":
    key = jax.random.PRNGKey(0)
    key, kx = jax.random.split(key)

    # Batch large enough to exercise the batch grid (2 tiles of 256 lanes);
    # still tiny in memory (512 x 2 f32 = 4 KiB).
    B = 512
    x = jax.random.normal(kx, (B, DIM), jnp.float32)
    s = jnp.float32(0.0)  # time argument, ignored by forward

    params = init_params(key)
    w0, b0, w_mid, b_mid, w_last, b_last = pack_params(params)

    out = matmul_system_forward(s, x, w0, b0, w_mid, b_mid, w_last, b_last)
    out = jax.block_until_ready(out)

    ref = _reference_forward(x, params)
    assert out.shape == (B, DIM), out.shape
    # Default MXU precision (bf16 passes) on f32 dots -> compare at 1e-3.
    assert jnp.allclose(out, ref, atol=1e-3, rtol=1e-3), (
        f"max abs err {jnp.max(jnp.abs(out - ref))}")

    print("KERNEL_OK")
</pallas_src>

<mosaic_0001>
module attributes {stable_mosaic.version = 11 : i64} {
  func.func @_mlp_kernel(%arg0: i32, %arg1: memref<2x256xf32, #tpu.memory_space<vmem>>, %arg2: memref<32x2xf32, #tpu.memory_space<vmem>>, %arg3: memref<32x1xf32, #tpu.memory_space<vmem>>, %arg4: memref<4x32x32xf32, #tpu.memory_space<vmem>>, %arg5: memref<4x32x1xf32, #tpu.memory_space<vmem>>, %arg6: memref<2x32xf32, #tpu.memory_space<vmem>>, %arg7: memref<2x1xf32, #tpu.memory_space<vmem>>, %arg8: memref<2x256xf32, #tpu.memory_space<vmem>>) attributes {dimension_semantics = [#tpu.dimension_semantics<parallel>], iteration_bounds = array<i64: 2>, scalar_prefetch = 0 : i64, scratch_operands = 0 : i64, tpu.core_type = #tpu.core_type<tc>, window_params = [{transform_indices = @transform_0, window_bounds = array<i64: 2, 256>}, {pipeline_mode = #tpu.pipeline_mode<synchronous>, transform_indices = @transform_1, window_bounds = array<i64: 32, 2>}, {pipeline_mode = #tpu.pipeline_mode<synchronous>, transform_indices = @transform_2, window_bounds = array<i64: 32, 1>}, {pipeline_mode = #tpu.pipeline_mode<synchronous>, transform_indices = @transform_3, window_bounds = array<i64: 4, 32, 32>}, {pipeline_mode = #tpu.pipeline_mode<synchronous>, transform_indices = @transform_4, window_bounds = array<i64: 4, 32, 1>}, {pipeline_mode = #tpu.pipeline_mode<synchronous>, transform_indices = @transform_5, window_bounds = array<i64: 2, 32>}, {pipeline_mode = #tpu.pipeline_mode<synchronous>, transform_indices = @transform_6, window_bounds = array<i64: 2, 1>}, {transform_indices = @transform_7, window_bounds = array<i64: 2, 256>}]} {
    %c0 = arith.constant 0 : index
    %c0_0 = arith.constant 0 : index
    %0 = vector.load %arg1[%c0, %c0_0] : memref<2x256xf32, #tpu.memory_space<vmem>>, vector<2x256xf32>
    %c0_1 = arith.constant 0 : index
    %c0_2 = arith.constant 0 : index
    %1 = vector.load %arg2[%c0_1, %c0_2] : memref<32x2xf32, #tpu.memory_space<vmem>>, vector<32x2xf32>
    %cst = arith.constant dense<0.000000e+00> : vector<32x256xf32>
    %2 = tpu.matmul %1, %0, %cst {dimension_numbers = #tpu.dot_dimension_numbers<[1], [0], [0], [1], [0, 0, 1, 1], [], []>} : vector<32x2xf32>, vector<2x256xf32>, vector<32x256xf32> -> vector<32x256xf32>
    %c0_3 = arith.constant 0 : index
    %c0_4 = arith.constant 0 : index
    %3 = vector.load %arg3[%c0_3, %c0_4] : memref<32x1xf32, #tpu.memory_space<vmem>>, vector<32x1xf32>
    %4 = vector.broadcast %3 : vector<32x1xf32> to vector<32x256xf32>
    %5 = arith.addf %2, %4 : vector<32x256xf32>
    %6 = math.tanh %5 : vector<32x256xf32>
    %c0_5 = arith.constant 0 : index
    %c0_6 = arith.constant 0 : index
    %c0_7 = arith.constant 0 : index
    %7 = vector.load %arg4[%c0_5, %c0_6, %c0_7] : memref<4x32x32xf32, #tpu.memory_space<vmem>>, vector<1x32x32xf32>
    %8 = vector.shape_cast %7 : vector<1x32x32xf32> to vector<32x32xf32>
    %cst_8 = arith.constant dense<0.000000e+00> : vector<32x256xf32>
    %9 = tpu.matmul %8, %6, %cst_8 {dimension_numbers = #tpu.dot_dimension_numbers<[1], [0], [0], [1], [0, 0, 1, 1], [], []>} : vector<32x32xf32>, vector<32x256xf32>, vector<32x256xf32> -> vector<32x256xf32>
    %c0_9 = arith.constant 0 : index
    %c0_10 = arith.constant 0 : index
    %c0_11 = arith.constant 0 : index
    %10 = vector.load %arg5[%c0_9, %c0_10, %c0_11] : memref<4x32x1xf32, #tpu.memory_space<vmem>>, vector<1x32x1xf32>
    %11 = vector.shape_cast %10 : vector<1x32x1xf32> to vector<32x1xf32>
    %12 = vector.broadcast %11 : vector<32x1xf32> to vector<32x256xf32>
    %13 = arith.addf %9, %12 : vector<32x256xf32>
    %14 = math.tanh %13 : vector<32x256xf32>
    %c1 = arith.constant 1 : index
    %c0_12 = arith.constant 0 : index
    %c0_13 = arith.constant 0 : index
    %15 = vector.load %arg4[%c1, %c0_12, %c0_13] : memref<4x32x32xf32, #tpu.memory_space<vmem>>, vector<1x32x32xf32>
    %16 = vector.shape_cast %15 : vector<1x32x32xf32> to vector<32x32xf32>
    %cst_14 = arith.constant dense<0.000000e+00> : vector<32x256xf32>
    %17 = tpu.matmul %16, %14, %cst_14 {dimension_numbers = #tpu.dot_dimension_numbers<[1], [0], [0], [1], [0, 0, 1, 1], [], []>} : vector<32x32xf32>, vector<32x256xf32>, vector<32x256xf32> -> vector<32x256xf32>
    %c1_15 = arith.constant 1 : index
    %c0_16 = arith.constant 0 : index
    %c0_17 = arith.constant 0 : index
    %18 = vector.load %arg5[%c1_15, %c0_16, %c0_17] : memref<4x32x1xf32, #tpu.memory_space<vmem>>, vector<1x32x1xf32>
    %19 = vector.shape_cast %18 : vector<1x32x1xf32> to vector<32x1xf32>
    %20 = vector.broadcast %19 : vector<32x1xf32> to vector<32x256xf32>
    %21 = arith.addf %17, %20 : vector<32x256xf32>
    %22 = math.tanh %21 : vector<32x256xf32>
    %c2 = arith.constant 2 : index
    %c0_18 = arith.constant 0 : index
    %c0_19 = arith.constant 0 : index
    %23 = vector.load %arg4[%c2, %c0_18, %c0_19] : memref<4x32x32xf32, #tpu.memory_space<vmem>>, vector<1x32x32xf32>
    %24 = vector.shape_cast %23 : vector<1x32x32xf32> to vector<32x32xf32>
    %cst_20 = arith.constant dense<0.000000e+00> : vector<32x256xf32>
    %25 = tpu.matmul %24, %22, %cst_20 {dimension_numbers = #tpu.dot_dimension_numbers<[1], [0], [0], [1], [0, 0, 1, 1], [], []>} : vector<32x32xf32>, vector<32x256xf32>, vector<32x256xf32> -> vector<32x256xf32>
    %c2_21 = arith.constant 2 : index
    %c0_22 = arith.constant 0 : index
    %c0_23 = arith.constant 0 : index
    %26 = vector.load %arg5[%c2_21, %c0_22, %c0_23] : memref<4x32x1xf32, #tpu.memory_space<vmem>>, vector<1x32x1xf32>
    %27 = vector.shape_cast %26 : vector<1x32x1xf32> to vector<32x1xf32>
    %28 = vector.broadcast %27 : vector<32x1xf32> to vector<32x256xf32>
    %29 = arith.addf %25, %28 : vector<32x256xf32>
    %30 = math.tanh %29 : vector<32x256xf32>
    %c3 = arith.constant 3 : index
    %c0_24 = arith.constant 0 : index
    %c0_25 = arith.constant 0 : index
    %31 = vector.load %arg4[%c3, %c0_24, %c0_25] : memref<4x32x32xf32, #tpu.memory_space<vmem>>, vector<1x32x32xf32>
    %32 = vector.shape_cast %31 : vector<1x32x32xf32> to vector<32x32xf32>
    %cst_26 = arith.constant dense<0.000000e+00> : vector<32x256xf32>
    %33 = tpu.matmul %32, %30, %cst_26 {dimension_numbers = #tpu.dot_dimension_numbers<[1], [0], [0], [1], [0, 0, 1, 1], [], []>} : vector<32x32xf32>, vector<32x256xf32>, vector<32x256xf32> -> vector<32x256xf32>
    %c3_27 = arith.constant 3 : index
    %c0_28 = arith.constant 0 : index
    %c0_29 = arith.constant 0 : index
    %34 = vector.load %arg5[%c3_27, %c0_28, %c0_29] : memref<4x32x1xf32, #tpu.memory_space<vmem>>, vector<1x32x1xf32>
    %35 = vector.shape_cast %34 : vector<1x32x1xf32> to vector<32x1xf32>
    %36 = vector.broadcast %35 : vector<32x1xf32> to vector<32x256xf32>
    %37 = arith.addf %33, %36 : vector<32x256xf32>
    %38 = math.tanh %37 : vector<32x256xf32>
    %c0_30 = arith.constant 0 : index
    %c0_31 = arith.constant 0 : index
    %39 = vector.load %arg6[%c0_30, %c0_31] : memref<2x32xf32, #tpu.memory_space<vmem>>, vector<2x32xf32>
    %cst_32 = arith.constant dense<0.000000e+00> : vector<2x256xf32>
    %40 = tpu.matmul %39, %38, %cst_32 {dimension_numbers = #tpu.dot_dimension_numbers<[1], [0], [0], [1], [0, 0, 1, 1], [], []>} : vector<2x32xf32>, vector<32x256xf32>, vector<2x256xf32> -> vector<2x256xf32>
    %c0_33 = arith.constant 0 : index
    %c0_34 = arith.constant 0 : index
    %41 = vector.load %arg7[%c0_33, %c0_34] : memref<2x1xf32, #tpu.memory_space<vmem>>, vector<2x1xf32>
    %42 = vector.broadcast %41 : vector<2x1xf32> to vector<2x256xf32>
    %43 = arith.addf %40, %42 : vector<2x256xf32>
    %c0_35 = arith.constant 0 : index
    %c0_36 = arith.constant 0 : index
    %44 = vector.load %arg8[%c0_35, %c0_36] : memref<2x256xf32, #tpu.memory_space<vmem>>, vector<2x256xf32>
    tpu.vector_store %arg8[%c0_35, %c0_36], %43 {strides = array<i32>} : memref<2x256xf32, #tpu.memory_space<vmem>>, vector<2x256xf32>,
    return
  }
  func.func @transform_0(%arg0: i32) -> (i32, i32) {
    %c0_i32 = arith.constant 0 : i32
    %c0_i32_0 = arith.constant 0 : i32
    return %c0_i32, %arg0 : i32, i32
  }
  func.func @transform_1(%arg0: i32) -> (i32, i32) {
    %c0_i32 = arith.constant 0 : i32
    %c0_i32_0 = arith.constant 0 : i32
    %c0_i32_1 = arith.constant 0 : i32
    return %c0_i32, %c0_i32_0 : i32, i32
  }
  func.func @transform_2(%arg0: i32) -> (i32, i32) {
    %c0_i32 = arith.constant 0 : i32
    %c0_i32_0 = arith.constant 0 : i32
    %c0_i32_1 = arith.constant 0 : i32
    return %c0_i32, %c0_i32_0 : i32, i32
  }
  func.func @transform_3(%arg0: i32) -> (i32, i32, i32) {
    %c0_i32 = arith.constant 0 : i32
    %c0_i32_0 = arith.constant 0 : i32
    %c0_i32_1 = arith.constant 0 : i32
    %c0_i32_2 = arith.constant 0 : i32
    return %c0_i32, %c0_i32_0, %c0_i32_1 : i32, i32, i32
  }
  func.func @transform_4(%arg0: i32) -> (i32, i32, i32) {
    %c0_i32 = arith.constant 0 : i32
    %c0_i32_0 = arith.constant 0 : i32
    %c0_i32_1 = arith.constant 0 : i32
    %c0_i32_2 = arith.constant 0 : i32
    return %c0_i32, %c0_i32_0, %c0_i32_1 : i32, i32, i32
  }
  func.func @transform_5(%arg0: i32) -> (i32, i32) {
    %c0_i32 = arith.constant 0 : i32
    %c0_i32_0 = arith.constant 0 : i32
    %c0_i32_1 = arith.constant 0 : i32
    return %c0_i32, %c0_i32_0 : i32, i32
  }
  func.func @transform_6(%arg0: i32) -> (i32, i32) {
    %c0_i32 = arith.constant 0 : i32
    %c0_i32_0 = arith.constant 0 : i32
    %c0_i32_1 = arith.constant 0 : i32
    return %c0_i32, %c0_i32_0 : i32, i32
  }
  func.func @transform_7(%arg0: i32) -> (i32, i32) {
    %c0_i32 = arith.constant 0 : i32
    %c0_i32_0 = arith.constant 0 : i32
    return %c0_i32, %arg0 : i32, i32
  }
}

</mosaic_0001>

<llo_original>
// kernel: matmul_system_forward.1
$region0: #{matmul_system_forward.1}
  #allocation0 [shape = 'u32[]', space=smem, size = 0x4, offset = 0x4, fixed_abs, tag = 'smem constant byte address 0x4 - core index']
  #allocation1 [shape = 'u32[72,128]{1,0:T(1,128)}', space=vmem, size = 0x9000, scoped, tag = 'internal scratch']
  %s0 = inlined_call_operand.vmem [shape: f32[2,512], index: 0, kind: input, shape index: {}]
  %s1 = inlined_call_operand.vmem [shape: f32[32,2], index: 1, kind: input, shape index: {}]
  %s2 = inlined_call_operand.vmem [shape: f32[32,1], index: 2, kind: input, shape index: {}]
  %s3 = inlined_call_operand.vmem [shape: f32[4,32,32], index: 3, kind: input, shape index: {}]
  %s4 = inlined_call_operand.vmem [shape: f32[4,32,1], index: 4, kind: input, shape index: {}]
  %s5 = inlined_call_operand.vmem [shape: f32[2,32], index: 5, kind: input, shape index: {}]
  %s6 = inlined_call_operand.vmem [shape: f32[2,1], index: 6, kind: input, shape index: {}]
  %s7 = inlined_call_operand.hbm [shape: f32[2,512], index: 7, kind: output, shape index: {}]
  %s8 = sld [smem:[#allocation0]]
  $region61: #{matmul_system_forward.1} parent=0
    _
  %s10 = ssub.s32 1, %s8
  %s11 = scalar_select 0, %s10, %s8
  $region1: #{matmul_system_forward.1} parent=0
    #allocation2 [shape = 'u8[4096]{0}', space=vmem, size = 0x1000, scoped, tag = 'output window, operand 0']
    #allocation3 [shape = 's32[2]{0}', space=sflag, size = 0x8, scoped, tag = 'scoped memory for matmul_system_forward.1']
    %12 = vsyncpa [#allocation3], 0
    %s13 = scalar_lea.sflag [#allocation3], 1
    %14 = vsyncpa %s13, 0
    loop: start=0, step=1, limit=4
    $region2: #{matmul_system_forward.1} parent=1 // loop_pre_header
      _
    $region3: #{matmul_system_forward.1} parent=1 // loop_header
      %s16 = sphi 0, %s20
      %p17 = scmp.ge.s32.totalorder %s16, 4
      %s26 = sphi 0, %s28
      %s29 = sphi 0, %s26
      %s30 = sphi 0, %s29
      %s46 = sphi 0, %s30
      %s50 = sphi 0, %s50
      %s52 = sphi 0, %s50
      %s53 = sphi 0, %s52
      %s67 = sphi 0, %s53
      %s71 = sphi 0, %s71
      %s73 = sphi 0, %s71
      %s74 = sphi 0, %s73
      %s88 = sphi 0, %s74
      %s92 = sphi 0, %s92
      %s94 = sphi 0, %s92
      %s95 = sphi 0, %s94
      %s109 = sphi 0, %s95
      %s113 = sphi 0, %s113
      %s115 = sphi 0, %s113
      %s116 = sphi 0, %s115
      %s130 = sphi 0, %s116
      %s134 = sphi 0, %s134
      %s136 = sphi 0, %s134
      %s137 = sphi 0, %s136
      %s151 = sphi 0, %s137
      %s155 = sphi 0, %s155
      %s157 = sphi 0, %s155
      %s158 = sphi 0, %s157
      %s172 = sphi 0, %s158
      %s178 = sphi 0, %s180
      %s181 = sphi 0, %s178
      %s182 = sphi 0, %s181
      %s198 = sphi 0, %s182
    $region4: #{matmul_system_forward.1} parent=1 // loop_header_branch
      %19 = sbr.rel (%p17) target = $region8
    $region5: #{matmul_system_forward.1} parent=1 // loop_body
      %s21 = ssub.s32 %s16, 1
      %s22 = ssub.s32 %s16, 2
      %s23 = sadd.s32 %s16, 1
      %s24 = ssub.s32 %s16, %s23
      %p25 = scmp.eq.s32.totalorder %s24, 0
      %s27 = sadd.s32 %s26, 1
      %s28 = scalar_select %p25, %s26, %s27
      %p31 = pneg %p25
      %p32 = scmp.eq.s32.totalorder %s16, 1
      %p33 = por %p31, %p32
      %p34 = scmp.ne.s32.totalorder %s26, %s29
      %p35 = scmp.eq.s32.totalorder %s16, 0
      %p36 = por %p34, %p35
      %p37 = scmp.ne.s32.totalorder %s26, %s29
      %p38 = scmp.eq.s32.totalorder %s21, 1
      %p39 = por %p37, %p38
      %p40 = scmp.ne.s32.totalorder %s29, %s30
      %p41 = scmp.eq.s32.totalorder %s21, 0
      %p42 = por %p40, %p41
      %p43 = scmp.ne.s32.totalorder %s29, %s30
      %p44 = scmp.eq.s32.totalorder %s22, 1
      %p45 = por %p43, %p44
      %p47 = scmp.ne.s32.totalorder %s30, %s46
      %p48 = scmp.eq.s32.totalorder %s22, 0
      %p49 = por %p47, %p48
      %s51 = sadd.s32 %s50, 1
      %p54 = scmp.eq.s32.totalorder %s16, 1
      %p55 = scmp.ne.s32.totalorder %s50, %s52
      %p56 = scmp.eq.s32.totalorder %s16, 0
      %p57 = por %p55, %p56
      %p58 = scmp.ne.s32.totalorder %s50, %s52
      %p59 = scmp.eq.s32.totalorder %s21, 1
      %p60 = por %p58, %p59
      %p61 = scmp.ne.s32.totalorder %s52, %s53
      %p62 = scmp.eq.s32.totalorder %s21, 0
      %p63 = por %p61, %p62
      %p64 = scmp.ne.s32.totalorder %s52, %s53
      %p65 = scmp.eq.s32.totalorder %s22, 1
      %p66 = por %p64, %p65
      %p68 = scmp.ne.s32.totalorder %s53, %s67
      %p69 = scmp.eq.s32.totalorder %s22, 0
      %p70 = por %p68, %p69
      %s72 = sadd.s32 %s71, 1
      %p75 = scmp.eq.s32.totalorder %s16, 1
      %p76 = scmp.ne.s32.totalorder %s71, %s73
      %p77 = scmp.eq.s32.totalorder %s16, 0
      %p78 = por %p76, %p77
      %p79 = scmp.ne.s32.totalorder %s71, %s73
      %p80 = scmp.eq.s32.totalorder %s21, 1
      %p81 = por %p79, %p80
      %p82 = scmp.ne.s32.totalorder %s73, %s74
      %p83 = scmp.eq.s32.totalorder %s21, 0
      %p84 = por %p82, %p83
      %p85 = scmp.ne.s32.totalorder %s73, %s74
      %p86 = scmp.eq.s32.totalorder %s22, 1
      %p87 = por %p85, %p86
      %p89 = scmp.ne.s32.totalorder %s74, %s88
      %p90 = scmp.eq.s32.totalorder %s22, 0
      %p91 = por %p89, %p90
      %s93 = sadd.s32 %s92, 1
      %p96 = scmp.eq.s32.totalorder %s16, 1
      %p97 = scmp.ne.s32.totalorder %s92, %s94
      %p98 = scmp.eq.s32.totalorder %s16, 0
      %p99 = por %p97, %p98
      %p100 = scmp.ne.s32.totalorder %s92, %s94
      %p101 = scmp.eq.s32.totalorder %s21, 1
      %p102 = por %p100, %p101
      %p103 = scmp.ne.s32.totalorder %s94, %s95
      %p104 = scmp.eq.s32.totalorder %s21, 0
      %p105 = por %p103, %p104
      %p106 = scmp.ne.s32.totalorder %s94, %s95
      %p107 = scmp.eq.s32.totalorder %s22, 1
      %p108 = por %p106, %p107
      %p110 = scmp.ne.s32.totalorder %s95, %s109
      %p111 = scmp.eq.s32.totalorder %s22, 0
      %p112 = por %p110, %p111
      %s114 = sadd.s32 %s113, 1
      %p117 = scmp.eq.s32.totalorder %s16, 1
      %p118 = scmp.ne.s32.totalorder %s113, %s115
      %p119 = scmp.eq.s32.totalorder %s16, 0
      %p120 = por %p118, %p119
      %p121 = scmp.ne.s32.totalorder %s113, %s115
      %p122 = scmp.eq.s32.totalorder %s21, 1
      %p123 = por %p121, %p122
      %p124 = scmp.ne.s32.totalorder %s115, %s116
      %p125 = scmp.eq.s32.totalorder %s21, 0
      %p126 = por %p124, %p125
      %p127 = scmp.ne.s32.totalorder %s115, %s116
      %p128 = scmp.eq.s32.totalorder %s22, 1
      %p129 = por %p127, %p128
      %p131 = scmp.ne.s32.totalorder %s116, %s130
      %p132 = scmp.eq.s32.totalorder %s22, 0
      %p133 = por %p131, %p132
      %s135 = sadd.s32 %s134, 1
      %p138 = scmp.eq.s32.totalorder %s16, 1
      %p139 = scmp.ne.s32.totalorder %s134, %s136
      %p140 = scmp.eq.s32.totalorder %s16, 0
      %p141 = por %p139, %p140
      %p142 = scmp.ne.s32.totalorder %s134, %s136
      %p143 = scmp.eq.s32.totalorder %s21, 1
      %p144 = por %p142, %p143
      %p145 = scmp.ne.s32.totalorder %s136, %s137
      %p146 = scmp.eq.s32.totalorder %s21, 0
      %p147 = por %p145, %p146
      %p148 = scmp.ne.s32.totalorder %s136, %s137
      %p149 = scmp.eq.s32.totalorder %s22, 1
      %p150 = por %p148, %p149
      %p152 = scmp.ne.s32.totalorder %s137, %s151
      %p153 = scmp.eq.s32.totalorder %s22, 0
      %p154 = por %p152, %p153
      %s156 = sadd.s32 %s155, 1
      %p159 = scmp.eq.s32.totalorder %s16, 1
      %p160 = scmp.ne.s32.totalorder %s155, %s157
      %p161 = scmp.eq.s32.totalorder %s16, 0
      %p162 = por %p160, %p161
      %p163 = scmp.ne.s32.totalorder %s155, %s157
      %p164 = scmp.eq.s32.totalorder %s21, 1
      %p165 = por %p163, %p164
      %p166 = scmp.ne.s32.totalorder %s157, %s158
      %p167 = scmp.eq.s32.totalorder %s21, 0
      %p168 = por %p166, %p167
      %p169 = scmp.ne.s32.totalorder %s157, %s158
      %p170 = scmp.eq.s32.totalorder %s22, 1
      %p171 = por %p169, %p170
      %p173 = scmp.ne.s32.totalorder %s158, %s172
      %p174 = scmp.eq.s32.totalorder %s22, 0
      %p175 = por %p173, %p174
      %s176 = ssub.s32 %s16, %s23
      %p177 = scmp.eq.s32.totalorder %s176, 0
      %s179 = sadd.s32 %s178, 1
      %s180 = scalar_select %p177, %s178, %s179
      %p183 = pneg %p177
      %p184 = scmp.eq.s32.totalorder %s16, 1
      %p185 = por %p183, %p184
      %p186 = scmp.ne.s32.totalorder %s178, %s181
      %p187 = scmp.eq.s32.totalorder %s16, 0
      %p188 = por %p186, %p187
      %p189 = scmp.ne.s32.totalorder %s178, %s181
      %p190 = scmp.eq.s32.totalorder %s21, 1
      %p191 = por %p189, %p190
      %p192 = scmp.ne.s32.totalorder %s181, %s182
      %p193 = scmp.eq.s32.totalorder %s21, 0
      %p194 = por %p192, %p193
      %p195 = scmp.ne.s32.totalorder %s181, %s182
      %p196 = scmp.eq.s32.totalorder %s22, 1
      %p197 = por %p195, %p196
      %p199 = scmp.ne.s32.totalorder %s182, %s198
      %p200 = scmp.eq.s32.totalorder %s22, 0
      %p201 = por %p199, %p200
      %p202 = scmp.le.s32.totalorder 1, %s16
      %p203 = scmp.lt.s32.totalorder %s16, 3
      %p204 = pnand %p202, %p203
      %p205 = pneg %p204
      // Predicated region
      $region9: #{matmul_system_forward.1} parent=5 // pred_check
        _
      $region10: #{matmul_system_forward.1} parent=5 // pred_check_branch
        %207 = sbr.rel (%p204) target = $region12
      $region11: #{matmul_system_forward.1} parent=5 // pred_region
        %s208 = ssub.s32 %s16, 1
        // Predicated region
        $region13: #{matmul_system_forward.1} parent=11 // pred_check
          %p209 = pneg %p63
        $region14: #{matmul_system_forward.1} parent=11 // pred_check_branch
          %211 = sbr.rel (%p209) target = $region16
        $region15: #{matmul_system_forward.1} parent=11 // pred_region
          _
        $region16: #{matmul_system_forward.1} parent=11 // pred_fallthru
          _
        // Predicated region
        $region17: #{matmul_system_forward.1} parent=11 // pred_check
          %p212 = pneg %p84
        $region18: #{matmul_system_forward.1} parent=11 // pred_check_branch
          %214 = sbr.rel (%p212) target = $region20
        $region19: #{matmul_system_forward.1} parent=11 // pred_region
          _
        $region20: #{matmul_system_forward.1} parent=11 // pred_fallthru
          _
        // Predicated region
        $region21: #{matmul_system_forward.1} parent=11 // pred_check
          %p215 = pneg %p105
        $region22: #{matmul_system_forward.1} parent=11 // pred_check_branch
          %217 = sbr.rel (%p215) target = $region24
        $region23: #{matmul_system_forward.1} parent=11 // pred_region
          _
        $region24: #{matmul_system_forward.1} parent=11 // pred_fallthru
          _
        // Predicated region
        $region25: #{matmul_system_forward.1} parent=11 // pred_check
          %p218 = pneg %p126
        $region26: #{matmul_system_forward.1} parent=11 // pred_check_branch
          %220 = sbr.rel (%p218) target = $region28
        $region27: #{matmul_system_forward.1} parent=11 // pred_region
          _
        $region28: #{matmul_system_forward.1} parent=11 // pred_fallthru
          _
        // Predicated region
        $region29: #{matmul_system_forward.1} parent=11 // pred_check
          %p221 = pneg %p147
        $region30: #{matmul_system_forward.1} parent=11 // pred_check_branch
          %223 = sbr.rel (%p221) target = $region32
        $region31: #{matmul_system_forward.1} parent=11 // pred_region
          _
        $region32: #{matmul_system_forward.1} parent=11 // pred_fallthru
          _
        // Predicated region
        $region33: #{matmul_system_forward.1} parent=11 // pred_check
          %p224 = pneg %p168
        $region34: #{matmul_system_forward.1} parent=11 // pred_check_branch
          %226 = sbr.rel (%p224) target = $region36
        $region35: #{matmul_system_forward.1} parent=11 // pred_region
          _
        $region36: #{matmul_system_forward.1} parent=11 // pred_fallthru
          _
      $region12: #{matmul_system_forward.1} parent=5 // pred_fallthru
        _
      %p227 = scmp.lt.s32.totalorder %s16, 2
      // Predicated region
      $region37: #{matmul_system_forward.1} parent=5 // pred_check
        %p228 = pneg %p227
      $region38: #{matmul_system_forward.1} parent=5 // pred_check_branch
        %230 = sbr.rel (%p228) target = $region40
      $region39: #{matmul_system_forward.1} parent=5 // pred_region
        // Predicated region
        $region41: #{matmul_system_forward.1} parent=39 // pred_check
          %p231 = pneg %p36
        $region42: #{matmul_system_forward.1} parent=39 // pred_check_branch
          %233 = sbr.rel (%p231) target = $region44
        $region43: #{matmul_system_forward.1} parent=39 // pred_region
          %s234 = smul.u32 2, %s16
          %p235 = scmp.lt.s32.totalorder %s234, 3
          %s236 = scalar_select %p235, %s234, 3
          %s237 = smul.addr %s236, 2
          %s238 = scalar_lea.vmem %s0, %s237
          %s239 = smul.u32 2, %s16
        $region44: #{matmul_system_forward.1} parent=39 // pred_fallthru
          _
      $region40: #{matmul_system_forward.1} parent=5 // pred_fallthru
        _
      %p240 = scmp.le.s32.totalorder 1, %s16
      %p241 = scmp.lt.s32.totalorder %s16, 3
      %p242 = pnand %p240, %p241
      %p243 = pneg %p242
      // Predicated region
      $region45: #{matmul_system_forward.1} parent=5 // pred_check
        _
      $region46: #{matmul_system_forward.1} parent=5 // pred_check_branch
        %245 = sbr.rel (%p242) target = $region48
      $region47: #{matmul_system_forward.1} parent=5 // pred_region
        %s246 = ssub.s32 %s16, 1
        %s247 = smul.u32 2, %s21
        %p248 = scmp.lt.s32.totalorder %s247, 3
        %s249 = scalar_select %p248, %s247, 3
        %s250 = smul.addr %s249, 2
        %s251 = scalar_lea.vmem %s0, %s250
        %p252 = pneg %p42
        %p253 = pneg %p39
        %p254 = pneg %p63
        %p255 = pneg %p60
        %p256 = pneg %p84
        %p257 = pneg %p81
        %p258 = pneg %p105
        %p259 = pneg %p102
        %p260 = pneg %p126
        %p261 = pneg %p123
        %p262 = pneg %p147
        %p263 = pneg %p144
        %p264 = pneg %p168
        %p265 = pneg %p165
        %p266 = pneg %p194
        %p267 = pneg %p191
        %s268 = sand.u32 %s181, 1
        %s269 = scalar_lea.sflag [#allocation3], %s268
        %s270 = sand.u32 %s181, 1
        %s271 = smul.addr %s270, 4
        %s272 = scalar_lea.vmem [#allocation2], %s271
        %s273 = smul.u32 2, %s21
        %p274 = scmp.lt.s32.totalorder %s273, 3
        %s275 = scalar_select %p274, %s273, 3
        %s276 = smul.addr %s275, 2
        %s277 = scalar_lea.vmem %s0, %s276
        %s278 = smul.u32 2, %s21
        %s279 = smul.u32 2, %s21
        %v280 = vld [vmem:[%s277] sm:$0xf]
        %v281 = vld [vmem:[%s1] sm:$0xff]
        %v282 = vld [vmem:[%s1 + $0x8] sm:$0xff]
        %v283 = vld [vmem:[%s1 + $0x10] sm:$0xff]
        %v284 = vld [vmem:[%s1 + $0x18] sm:$0xff]
        %v285 = vld [vmem:[%s2] sm:$0xff]
        %v286 = vld [vmem:[%s2 + $0x8] sm:$0xff]
        %v287 = vld [vmem:[%s2 + $0x10] sm:$0xff]
        %v288 = vld [vmem:[%s2 + $0x18] sm:$0xff]
        %290 = vset.pattern.permute.xlu0 0
        %291 = vperm.xlu0 %290, %v285
        %v292 = vpop.permute.xlu0 %291
        %295 = vset.pattern.permute.xlu0 0
        %296 = vperm.xlu0 %295, %v286
        %v297 = vpop.permute.xlu0 %296
        %300 = vset.pattern.permute.xlu0 0
        %301 = vperm.xlu0 %300, %v287
        %v302 = vpop.permute.xlu0 %301
        %305 = vset.pattern.permute.xlu0 0
        %306 = vperm.xlu0 %305, %v288
        %v307 = vpop.permute.xlu0 %306
        %310 = vst [vmem:[#allocation1] ss:$4 sm:$0xff] %v280
        %v311 = vld.sshfl [vmem:[#allocation1] sm:$0xff pattern:$0x73625140]
        %v312 = vld.sshfl [vmem:[#allocation1 + $0x8] sm:$0xff pattern:$0x73625140]
        %vm313 = vcmask 15360
        %v315 = vsel %vm313, %v281, 0
        %v318 = vsel %vm313, %v282, 0
        %v321 = vsel %vm313, %v283, 0
        %v324 = vsel %vm313, %v284, 0
        %vm326 = vcmask 1041408
        %v327 = vsel %vm326, %v311, 0
        %v329 = vsel %vm326, %v312, 0
        %331 = vmatpush.msra.mxu0 0.0
        %332 = vmatpush.msra.mxu0 0.0
        %333 = vmatpush.msra.mxu0 0.0
        %334 = vmatpush.msra.mxu0 0.0
        %335 = vmatpush.msra.mxu0 0.0
        %336 = vmatpush.msra.mxu0 0.0
        %337 = vmatpush.msra.mxu0 0.0
        %338 = vmatpush.msra.mxu0 0.0
        %339 = vmatpush.msra.mxu0 0.0
        %340 = vmatpush.msra.mxu0 0.0
        %341 = vmatpush.msra.mxu0 0.0
        %342 = vmatpush.msra.mxu0 0.0
        %343 = vmatpush.msra.mxu0 0.0
        %344 = vmatpush.msra.mxu0 0.0
        %345 = vmatpush.msra.mxu0 0.0
        %346 = vmatpush.msra.mxu0 %v327
        %347 = vmatmul.f32.gmra.mxu0 %v315
        %v348 = vpop.f32.mrf.mxu0
        %v349 = vadd.f32 %v292, %v348
        %350 = vmatmul.f32.gmra.mxu0 %v318
        %v351 = vpop.f32.mrf.mxu0
        %v352 = vadd.f32 %v297, %v351
        %353 = vmatmul.f32.gmra.mxu0 %v321
        %v354 = vpop.f32.mrf.mxu0
        %v355 = vadd.f32 %v302, %v354
        %356 = vmatmul.f32.gmra.mxu0 %v324
        %v357 = vpop.f32.mrf.mxu0
        %v358 = vadd.f32 %v307, %v357
        %359 = vdwg.mxu0
        %360 = vmatpush.msra.mxu0 0.0
        %361 = vmatpush.msra.mxu0 0.0
        %362 = vmatpush.msra.mxu0 0.0
        %363 = vmatpush.msra.mxu0 0.0
        %364 = vmatpush.msra.mxu0 0.0
        %365 = vmatpush.msra.mxu0 0.0
        %366 = vmatpush.msra.mxu0 0.0
        %367 = vmatpush.msra.mxu0 0.0
        %368 = vmatpush.msra.mxu0 0.0
        %369 = vmatpush.msra.mxu0 0.0
        %370 = vmatpush.msra.mxu0 0.0
        %371 = vmatpush.msra.mxu0 0.0
        %372 = vmatpush.msra.mxu0 0.0
        %373 = vmatpush.msra.mxu0 0.0
        %374 = vmatpush.msra.mxu0 0.0
        %375 = vmatpush.msra.mxu0 %v329
        %376 = vmatmul.f32.gmra.mxu0 %v315
        %v377 = vpop.f32.mrf.mxu0
        %v378 = vadd.f32 %v292, %v377
        %379 = vmatmul.f32.gmra.mxu0 %v318
        %v380 = vpop.f32.mrf.mxu0
        %v381 = vadd.f32 %v297, %v380
        %382 = vmatmul.f32.gmra.mxu0 %v321
        %v383 = vpop.f32.mrf.mxu0
        %v384 = vadd.f32 %v302, %v383
        %385 = vmatmul.f32.gmra.mxu0 %v324
        %v386 = vpop.f32.mrf.mxu0
        %v387 = vadd.f32 %v307, %v386
        %388 = vdwg.mxu0
        %v389 = vtanh.pop %v349
        %v390 = vtanh.pop %v378
        %v391 = vtanh.pop %v352
        %v392 = vtanh.pop %v381
        %v393 = vtanh.pop %v355
        %v394 = vtanh.pop %v384
        %v395 = vtanh.pop %v358
        %v396 = vtanh.pop %v387
        %v397 = vld [vmem:[%s3] sm:$0xff]
        %v398 = vld [vmem:[%s3 + $0x8] sm:$0xff]
        %v399 = vld [vmem:[%s3 + $0x10] sm:$0xff]
        %v400 = vld [vmem:[%s3 + $0x18] sm:$0xff]
        %v401 = vld [vmem:[%s4] sm:$0xff]
        %v402 = vld [vmem:[%s4 + $0x8] sm:$0xff]
        %v403 = vld [vmem:[%s4 + $0x10] sm:$0xff]
        %v404 = vld [vmem:[%s4 + $0x18] sm:$0xff]
        %406 = vset.pattern.permute.xlu0 0
        %407 = vperm.xlu0 %406, %v401
        %v408 = vpop.permute.xlu0 %407
        %411 = vset.pattern.permute.xlu0 0
        %412 = vperm.xlu0 %411, %v402
        %v413 = vpop.permute.xlu0 %412
        %416 = vset.pattern.permute.xlu0 0
        %417 = vperm.xlu0 %416, %v403
        %v418 = vpop.permute.xlu0 %417
        %421 = vset.pattern.permute.xlu0 0
        %422 = vperm.xlu0 %421, %v404
        %v423 = vpop.permute.xlu0 %422
        %vm425 = vcmask 261120
        %v427 = vsel %vm425, %v397, 0
        %v430 = vsel %vm425, %v398, 0
        %v433 = vsel %vm425, %v399, 0
        %v436 = vsel %vm425, %v400, 0
        %438 = vmatpush.msra.mxu0 0.0
        %439 = vmatpush.msra.mxu0 0.0
        %440 = vmatpush.msra.mxu0 0.0
        %441 = vmatpush.msra.mxu0 0.0
        %442 = vmatpush.msra.mxu0 0.0
        %443 = vmatpush.msra.mxu0 0.0
        %444 = vmatpush.msra.mxu0 0.0
        %445 = vmatpush.msra.mxu0 0.0
        %446 = vmatpush.msra.mxu0 0.0
        %447 = vmatpush.msra.mxu0 0.0
        %448 = vmatpush.msra.mxu0 0.0
        %449 = vmatpush.msra.mxu0 0.0
        %450 = vmatpush.msra.mxu0 %v395
        %451 = vmatpush.msra.mxu0 %v393
        %452 = vmatpush.msra.mxu0 %v391
        %453 = vmatpush.msra.mxu0 %v389
        %454 = vmatmul.f32.gmra.mxu0 %v427
        %v455 = vpop.f32.mrf.mxu0
        %v456 = vadd.f32 %v408, %v455
        %457 = vmatmul.f32.gmra.mxu0 %v430
        %v458 = vpop.f32.mrf.mxu0
        %v459 = vadd.f32 %v413, %v458
        %460 = vmatmul.f32.gmra.mxu0 %v433
        %v461 = vpop.f32.mrf.mxu0
        %v462 = vadd.f32 %v418, %v461
        %463 = vmatmul.f32.gmra.mxu0 %v436
        %v464 = vpop.f32.mrf.mxu0
        %v465 = vadd.f32 %v423, %v464
        %466 = vdwg.mxu0
        %467 = vmatpush.msra.mxu0 0.0
        %468 = vmatpush.msra.mxu0 0.0
        %469 = vmatpush.msra.mxu0 0.0
        %470 = vmatpush.msra.mxu0 0.0
        %471 = vmatpush.msra.mxu0 0.0
        %472 = vmatpush.msra.mxu0 0.0
        %473 = vmatpush.msra.mxu0 0.0
        %474 = vmatpush.msra.mxu0 0.0
        %475 = vmatpush.msra.mxu0 0.0
        %476 = vmatpush.msra.mxu0 0.0
        %477 = vmatpush.msra.mxu0 0.0
        %478 = vmatpush.msra.mxu0 0.0
        %479 = vmatpush.msra.mxu0 %v396
        %480 = vmatpush.msra.mxu0 %v394
        %481 = vmatpush.msra.mxu0 %v392
        %482 = vmatpush.msra.mxu0 %v390
        %483 = vmatmul.f32.gmra.mxu0 %v427
        %v484 = vpop.f32.mrf.mxu0
        %v485 = vadd.f32 %v408, %v484
        %486 = vmatmul.f32.gmra.mxu0 %v430
        %v487 = vpop.f32.mrf.mxu0
        %v488 = vadd.f32 %v413, %v487
        %489 = vmatmul.f32.gmra.mxu0 %v433
        %v490 = vpop.f32.mrf.mxu0
        %v491 = vadd.f32 %v418, %v490
        %492 = vmatmul.f32.gmra.mxu0 %v436
        %v493 = vpop.f32.mrf.mxu0
        %v494 = vadd.f32 %v423, %v493
        %495 = vdwg.mxu0
        %v496 = vtanh.pop %v456
        %v497 = vtanh.pop %v485
        %v498 = vtanh.pop %v459
        %v499 = vtanh.pop %v488
        %v500 = vtanh.pop %v462
        %v501 = vtanh.pop %v491
        %v502 = vtanh.pop %v465
        %v503 = vtanh.pop %v494
        %s504 = scalar_lea.vmem %s3, 32
        %v505 = vld [vmem:[%s504] sm:$0xff]
        %v506 = vld [vmem:[%s504 + $0x8] sm:$0xff]
        %v507 = vld [vmem:[%s504 + $0x10] sm:$0xff]
        %v508 = vld [vmem:[%s504 + $0x18] sm:$0xff]
        %s509 = scalar_lea.vmem %s4, 32
        %v510 = vld [vmem:[%s509] sm:$0xff]
        %v511 = vld [vmem:[%s509 + $0x8] sm:$0xff]
        %v512 = vld [vmem:[%s509 + $0x10] sm:$0xff]
        %v513 = vld [vmem:[%s509 + $0x18] sm:$0xff]
        %515 = vset.pattern.permute.xlu0 0
        %516 = vperm.xlu0 %515, %v510
        %v517 = vpop.permute.xlu0 %516
        %520 = vset.pattern.permute.xlu0 0
        %521 = vperm.xlu0 %520, %v511
        %v522 = vpop.permute.xlu0 %521
        %525 = vset.pattern.permute.xlu0 0
        %526 = vperm.xlu0 %525, %v512
        %v527 = vpop.permute.xlu0 %526
        %530 = vset.pattern.permute.xlu0 0
        %531 = vperm.xlu0 %530, %v513
        %v532 = vpop.permute.xlu0 %531
        %v535 = vsel %vm425, %v505, 0
        %v538 = vsel %vm425, %v506, 0
        %v541 = vsel %vm425, %v507, 0
        %v544 = vsel %vm425, %v508, 0
        %546 = vmatpush.msra.mxu0 0.0
        %547 = vmatpush.msra.mxu0 0.0
        %548 = vmatpush.msra.mxu0 0.0
        %549 = vmatpush.msra.mxu0 0.0
        %550 = vmatpush.msra.mxu0 0.0
        %551 = vmatpush.msra.mxu0 0.0
        %552 = vmatpush.msra.mxu0 0.0
        %553 = vmatpush.msra.mxu0 0.0
        %554 = vmatpush.msra.mxu0 0.0
        %555 = vmatpush.msra.mxu0 0.0
        %556 = vmatpush.msra.mxu0 0.0
        %557 = vmatpush.msra.mxu0 0.0
        %558 = vmatpush.msra.mxu0 %v502
        %559 = vmatpush.msra.mxu0 %v500
        %560 = vmatpush.msra.mxu0 %v498
        %561 = vmatpush.msra.mxu0 %v496
        %562 = vmatmul.f32.gmra.mxu0 %v535
        %v563 = vpop.f32.mrf.mxu0
        %v564 = vadd.f32 %v517, %v563
        %565 = vmatmul.f32.gmra.mxu0 %v538
        %v566 = vpop.f32.mrf.mxu0
        %v567 = vadd.f32 %v522, %v566
        %568 = vmatmul.f32.gmra.mxu0 %v541
        %v569 = vpop.f32.mrf.mxu0
        %v570 = vadd.f32 %v527, %v569
        %571 = vmatmul.f32.gmra.mxu0 %v544
        %v572 = vpop.f32.mrf.mxu0
        %v573 = vadd.f32 %v532, %v572
        %574 = vdwg.mxu0
        %575 = vmatpush.msra.mxu0 0.0
        %576 = vmatpush.msra.mxu0 0.0
        %577 = vmatpush.msra.mxu0 0.0
        %578 = vmatpush.msra.mxu0 0.0
        %579 = vmatpush.msra.mxu0 0.0
        %580 = vmatpush.msra.mxu0 0.0
        %581 = vmatpush.msra.mxu0 0.0
        %582 = vmatpush.msra.mxu0 0.0
        %583 = vmatpush.msra.mxu0 0.0
        %584 = vmatpush.msra.mxu0 0.0
        %585 = vmatpush.msra.mxu0 0.0
        %586 = vmatpush.msra.mxu0 0.0
        %587 = vmatpush.msra.mxu0 %v503
        %588 = vmatpush.msra.mxu0 %v501
        %589 = vmatpush.msra.mxu0 %v499
        %590 = vmatpush.msra.mxu0 %v497
        %591 = vmatmul.f32.gmra.mxu0 %v535
        %v592 = vpop.f32.mrf.mxu0
        %v593 = vadd.f32 %v517, %v592
        %594 = vmatmul.f32.gmra.mxu0 %v538
        %v595 = vpop.f32.mrf.mxu0
        %v596 = vadd.f32 %v522, %v595
        %597 = vmatmul.f32.gmra.mxu0 %v541
        %v598 = vpop.f32.mrf.mxu0
        %v599 = vadd.f32 %v527, %v598
        %600 = vmatmul.f32.gmra.mxu0 %v544
        %v601 = vpop.f32.mrf.mxu0
        %v602 = vadd.f32 %v532, %v601
        %603 = vdwg.mxu0
        %v604 = vtanh.pop %v564
        %v605 = vtanh.pop %v593
        %v606 = vtanh.pop %v567
        %v607 = vtanh.pop %v596
        %v608 = vtanh.pop %v570
        %v609 = vtanh.pop %v599
        %v610 = vtanh.pop %v573
        %v611 = vtanh.pop %v602
        %s612 = scalar_lea.vmem %s3, 64
        %v613 = vld [vmem:[%s612] sm:$0xff]
        %v614 = vld [vmem:[%s612 + $0x8] sm:$0xff]
        %v615 = vld [vmem:[%s612 + $0x10] sm:$0xff]
        %v616 = vld [vmem:[%s612 + $0x18] sm:$0xff]
        %s617 = scalar_lea.vmem %s4, 64
        %v618 = vld [vmem:[%s617] sm:$0xff]
        %v619 = vld [vmem:[%s617 + $0x8] sm:$0xff]
        %v620 = vld [vmem:[%s617 + $0x10] sm:$0xff]
        %v621 = vld [vmem:[%s617 + $0x18] sm:$0xff]
        %623 = vset.pattern.permute.xlu0 0
        %624 = vperm.xlu0 %623, %v618
        %v625 = vpop.permute.xlu0 %624
        %628 = vset.pattern.permute.xlu0 0
        %629 = vperm.xlu0 %628, %v619
        %v630 = vpop.permute.xlu0 %629
        %633 = vset.pattern.permute.xlu0 0
        %634 = vperm.xlu0 %633, %v620
        %v635 = vpop.permute.xlu0 %634
        %638 = vset.pattern.permute.xlu0 0
        %639 = vperm.xlu0 %638, %v621
        %v640 = vpop.permute.xlu0 %639
        %v643 = vsel %vm425, %v613, 0
        %v646 = vsel %vm425, %v614, 0
        %v649 = vsel %vm425, %v615, 0
        %v652 = vsel %vm425, %v616, 0
        %654 = vmatpush.msra.mxu0 0.0
        %655 = vmatpush.msra.mxu0 0.0
        %656 = vmatpush.msra.mxu0 0.0
        %657 = vmatpush.msra.mxu0 0.0
        %658 = vmatpush.msra.mxu0 0.0
        %659 = vmatpush.msra.mxu0 0.0
        %660 = vmatpush.msra.mxu0 0.0
        %661 = vmatpush.msra.mxu0 0.0
        %662 = vmatpush.msra.mxu0 0.0
        %663 = vmatpush.msra.mxu0 0.0
        %664 = vmatpush.msra.mxu0 0.0
        %665 = vmatpush.msra.mxu0 0.0
        %666 = vmatpush.msra.mxu0 %v610
        %667 = vmatpush.msra.mxu0 %v608
        %668 = vmatpush.msra.mxu0 %v606
        %669 = vmatpush.msra.mxu0 %v604
        %670 = vmatmul.f32.gmra.mxu0 %v643
        %v671 = vpop.f32.mrf.mxu0
        %v672 = vadd.f32 %v625, %v671
        %673 = vmatmul.f32.gmra.mxu0 %v646
        %v674 = vpop.f32.mrf.mxu0
        %v675 = vadd.f32 %v630, %v674
        %676 = vmatmul.f32.gmra.mxu0 %v649
        %v677 = vpop.f32.mrf.mxu0
        %v678 = vadd.f32 %v635, %v677
        %679 = vmatmul.f32.gmra.mxu0 %v652
        %v680 = vpop.f32.mrf.mxu0
        %v681 = vadd.f32 %v640, %v680
        %682 = vdwg.mxu0
        %683 = vmatpush.msra.mxu0 0.0
        %684 = vmatpush.msra.mxu0 0.0
        %685 = vmatpush.msra.mxu0 0.0
        %686 = vmatpush.msra.mxu0 0.0
        %687 = vmatpush.msra.mxu0 0.0
        %688 = vmatpush.msra.mxu0 0.0
        %689 = vmatpush.msra.mxu0 0.0
        %690 = vmatpush.msra.mxu0 0.0
        %691 = vmatpush.msra.mxu0 0.0
        %692 = vmatpush.msra.mxu0 0.0
        %693 = vmatpush.msra.mxu0 0.0
        %694 = vmatpush.msra.mxu0 0.0
        %695 = vmatpush.msra.mxu0 %v611
        %696 = vmatpush.msra.mxu0 %v609
        %697 = vmatpush.msra.mxu0 %v607
        %698 = vmatpush.msra.mxu0 %v605
        %699 = vmatmul.f32.gmra.mxu0 %v643
        %v700 = vpop.f32.mrf.mxu0
        %v701 = vadd.f32 %v625, %v700
        %702 = vmatmul.f32.gmra.mxu0 %v646
        %v703 = vpop.f32.mrf.mxu0
        %v704 = vadd.f32 %v630, %v703
        %705 = vmatmul.f32.gmra.mxu0 %v649
        %v706 = vpop.f32.mrf.mxu0
        %v707 = vadd.f32 %v635, %v706
        %708 = vmatmul.f32.gmra.mxu0 %v652
        %v709 = vpop.f32.mrf.mxu0
        %v710 = vadd.f32 %v640, %v709
        %711 = vdwg.mxu0
        %v712 = vtanh.pop %v672
        %v713 = vtanh.pop %v701
        %v714 = vtanh.pop %v675
        %v715 = vtanh.pop %v704
        %v716 = vtanh.pop %v678
        %v717 = vtanh.pop %v707
        %v718 = vtanh.pop %v681
        %v719 = vtanh.pop %v710
        %s720 = scalar_lea.vmem %s3, 96
        %v721 = vld [vmem:[%s720] sm:$0xff]
        %v722 = vld [vmem:[%s720 + $0x8] sm:$0xff]
        %v723 = vld [vmem:[%s720 + $0x10] sm:$0xff]
        %v724 = vld [vmem:[%s720 + $0x18] sm:$0xff]
        %s725 = scalar_lea.vmem %s4, 96
        %v726 = vld [vmem:[%s725] sm:$0xff]
        %v727 = vld [vmem:[%s725 + $0x8] sm:$0xff]
        %v728 = vld [vmem:[%s725 + $0x10] sm:$0xff]
        %v729 = vld [vmem:[%s725 + $0x18] sm:$0xff]
        %731 = vset.pattern.permute.xlu0 0
        %732 = vperm.xlu0 %731, %v726
        %v733 = vpop.permute.xlu0 %732
        %736 = vset.pattern.permute.xlu0 0
        %737 = vperm.xlu0 %736, %v727
        %v738 = vpop.permute.xlu0 %737
        %741 = vset.pattern.permute.xlu0 0
        %742 = vperm.xlu0 %741, %v728
        %v743 = vpop.permute.xlu0 %742
        %746 = vset.pattern.permute.xlu0 0
        %747 = vperm.xlu0 %746, %v729
        %v748 = vpop.permute.xlu0 %747
        %v751 = vsel %vm425, %v721, 0
        %v754 = vsel %vm425, %v722, 0
        %v757 = vsel %vm425, %v723, 0
        %v760 = vsel %vm425, %v724, 0
        %762 = vmatpush.msra.mxu0 0.0
        %763 = vmatpush.msra.mxu0 0.0
        %764 = vmatpush.msra.mxu0 0.0
        %765 = vmatpush.msra.mxu0 0.0
        %766 = vmatpush.msra.mxu0 0.0
        %767 = vmatpush.msra.mxu0 0.0
        %768 = vmatpush.msra.mxu0 0.0
        %769 = vmatpush.msra.mxu0 0.0
        %770 = vmatpush.msra.mxu0 0.0
        %771 = vmatpush.msra.mxu0 0.0
        %772 = vmatpush.msra.mxu0 0.0
        %773 = vmatpush.msra.mxu0 0.0
        %774 = vmatpush.msra.mxu0 %v718
        %775 = vmatpush.msra.mxu0 %v716
        %776 = vmatpush.msra.mxu0 %v714
        %777 = vmatpush.msra.mxu0 %v712
        %778 = vmatmul.f32.gmra.mxu0 %v751
        %v779 = vpop.f32.mrf.mxu0
        %v780 = vadd.f32 %v733, %v779
        %781 = vmatmul.f32.gmra.mxu0 %v754
        %v782 = vpop.f32.mrf.mxu0
        %v783 = vadd.f32 %v738, %v782
        %784 = vmatmul.f32.gmra.mxu0 %v757
        %v785 = vpop.f32.mrf.mxu0
        %v786 = vadd.f32 %v743, %v785
        %787 = vmatmul.f32.gmra.mxu0 %v760
        %v788 = vpop.f32.mrf.mxu0
        %v789 = vadd.f32 %v748, %v788
        %790 = vdwg.mxu0
        %791 = vmatpush.msra.mxu0 0.0
        %792 = vmatpush.msra.mxu0 0.0
        %793 = vmatpush.msra.mxu0 0.0
        %794 = vmatpush.msra.mxu0 0.0
        %795 = vmatpush.msra.mxu0 0.0
        %796 = vmatpush.msra.mxu0 0.0
        %797 = vmatpush.msra.mxu0 0.0
        %798 = vmatpush.msra.mxu0 0.0
        %799 = vmatpush.msra.mxu0 0.0
        %800 = vmatpush.msra.mxu0 0.0
        %801 = vmatpush.msra.mxu0 0.0
        %802 = vmatpush.msra.mxu0 0.0
        %803 = vmatpush.msra.mxu0 %v719
        %804 = vmatpush.msra.mxu0 %v717
        %805 = vmatpush.msra.mxu0 %v715
        %806 = vmatpush.msra.mxu0 %v713
        %807 = vmatmul.f32.gmra.mxu0 %v751
        %v808 = vpop.f32.mrf.mxu0
        %v809 = vadd.f32 %v733, %v808
        %810 = vmatmul.f32.gmra.mxu0 %v754
        %v811 = vpop.f32.mrf.mxu0
        %v812 = vadd.f32 %v738, %v811
        %813 = vmatmul.f32.gmra.mxu0 %v757
        %v814 = vpop.f32.mrf.mxu0
        %v815 = vadd.f32 %v743, %v814
        %816 = vmatmul.f32.gmra.mxu0 %v760
        %v817 = vpop.f32.mrf.mxu0
        %v818 = vadd.f32 %v748, %v817
        %819 = vdwg.mxu0
        %v820 = vtanh.pop %v780
        %v821 = vtanh.pop %v809
        %v822 = vtanh.pop %v783
        %v823 = vtanh.pop %v812
        %v824 = vtanh.pop %v786
        %v825 = vtanh.pop %v815
        %v826 = vtanh.pop %v789
        %v827 = vtanh.pop %v818
        %v828 = vld [vmem:[%s5] sm:$0x3]
        %v829 = vld [vmem:[%s6] sm:$0x3]
        %831 = vset.pattern.permute.xlu0 0
        %832 = vperm.xlu0 %831, %v829
        %v833 = vpop.permute.xlu0 %832
        %v836 = vsel %vm425, %v828, 0
        %838 = vmatpush.msra.mxu0 0.0
        %839 = vmatpush.msra.mxu0 0.0
        %840 = vmatpush.msra.mxu0 0.0
        %841 = vmatpush.msra.mxu0 0.0
        %842 = vmatpush.msra.mxu0 0.0
        %843 = vmatpush.msra.mxu0 0.0
        %844 = vmatpush.msra.mxu0 0.0
        %845 = vmatpush.msra.mxu0 0.0
        %846 = vmatpush.msra.mxu0 0.0
        %847 = vmatpush.msra.mxu0 0.0
        %848 = vmatpush.msra.mxu0 0.0
        %849 = vmatpush.msra.mxu0 0.0
        %850 = vmatpush.msra.mxu0 %v826
        %851 = vmatpush.msra.mxu0 %v824
        %852 = vmatpush.msra.mxu0 %v822
        %853 = vmatpush.msra.mxu0 %v820
        %854 = vmatmul.f32.gmra.mxu0 %v836
        %v855 = vpop.f32.mrf.mxu0
        %v856 = vadd.f32 %v833, %v855
        %857 = vdwg.mxu0
        %858 = vmatpush.msra.mxu0 0.0
        %859 = vmatpush.msra.mxu0 0.0
        %860 = vmatpush.msra.mxu0 0.0
        %861 = vmatpush.msra.mxu0 0.0
        %862 = vmatpush.msra.mxu0 0.0
        %863 = vmatpush.msra.mxu0 0.0
        %864 = vmatpush.msra.mxu0 0.0
        %865 = vmatpush.msra.mxu0 0.0
        %866 = vmatpush.msra.mxu0 0.0
        %867 = vmatpush.msra.mxu0 0.0
        %868 = vmatpush.msra.mxu0 0.0
        %869 = vmatpush.msra.mxu0 0.0
        %870 = vmatpush.msra.mxu0 %v827
        %871 = vmatpush.msra.mxu0 %v825
        %872 = vmatpush.msra.mxu0 %v823
        %873 = vmatpush.msra.mxu0 %v821
        %874 = vmatmul.f32.gmra.mxu0 %v836
        %v875 = vpop.f32.mrf.mxu0
        %v876 = vadd.f32 %v833, %v875
        %877 = vdwg.mxu0
        %v880 = vrot.slane %v876, 6
        %v881 = vsel %vm326, %v856, %v880
        %883 = vst [vmem:[%s272] sm:$0xf] %v881
        %s884 = sand.u32 %s181, 1
        %s885 = scalar_lea.sflag [#allocation3], %s884
        %s886 = sand.u32 %s181, 1
        %s887 = smul.addr %s886, 4
        %s888 = scalar_lea.vmem [#allocation2], %s887
        // Predicated region
        $region49: #{matmul_system_forward.1} parent=47 // pred_check
          %p889 = pneg %p191
        $region50: #{matmul_system_forward.1} parent=47 // pred_check_branch
          %891 = sbr.rel (%p889) target = $region52
        $region51: #{matmul_system_forward.1} parent=47 // pred_region
          %s892 = smul.u32 2, %s21
          %894 = vsyncadd %s885, 0
          %s895 = smul.addr %s892, 2
          %s896 = scalar_lea.hbm %s7, %s895
          %s898 = sshll.u32 %s888, 4
          %s899 = int_to_ptr.vmem [resolvable:$true] %s898
          %s900 = sshll.u32 %s896, 4
          %s901 = int_to_ptr.hbm [resolvable:$true] %s900
          %903 = dma.vmem_to_hbm [thread:$0]  %s899, 64, %s901, %s885
        $region52: #{matmul_system_forward.1} parent=47 // pred_fallthru
          _
      $region48: #{matmul_system_forward.1} parent=5 // pred_fallthru
        _
      %p904 = scmp.le.s32.totalorder 2, %s16
      // Predicated region
      $region53: #{matmul_system_forward.1} parent=5 // pred_check
        %p905 = pneg %p904
      $region54: #{matmul_system_forward.1} parent=5 // pred_check_branch
        %907 = sbr.rel (%p905) target = $region56
      $region55: #{matmul_system_forward.1} parent=5 // pred_region
        %s908 = ssub.s32 %s16, 2
        // Predicated region
        $region57: #{matmul_system_forward.1} parent=55 // pred_check
          %p909 = pneg %p197
        $region58: #{matmul_system_forward.1} parent=55 // pred_check_branch
          %911 = sbr.rel (%p909) target = $region60
        $region59: #{matmul_system_forward.1} parent=55 // pred_region
          %s912 = sand.u32 %s182, 1
          %s913 = scalar_lea.sflag [#allocation3], %s912
          %s914 = sand.u32 %s182, 1
          %s915 = smul.addr %s914, 4
          %s916 = scalar_lea.vmem [#allocation2], %s915
          %918 = dma.done %s913, 64
        $region60: #{matmul_system_forward.1} parent=55 // pred_fallthru
          _
      $region56: #{matmul_system_forward.1} parent=5 // pred_fallthru
        _
    $region6: #{matmul_system_forward.1} parent=1 // loop_footer
      %s20 = sadd.s32 1, %s16
    $region7: #{matmul_system_forward.1} parent=1 // loop_footer_branch
      %15 = sbr.rel target = $region3
    $region8: #{matmul_system_forward.1} parent=1 // loop_exit
      _
    %919 = vsyncpa [#allocation3], 1
    %s920 = scalar_lea.sflag [#allocation3], 1
    %921 = vsyncpa %s920, 1

</llo_original>
